<compile_context>
chip_gen: v5e
topology: v5e:2x2
jax: 0.10.0
libtpu: 0.0.40
codegen_flags: <defaults>
</compile_context>

<pallas_src>
import functools

import jax
import jax.numpy as jnp
from jax.experimental import pallas as pl
from jax.experimental.pallas import tpu as pltpu

LANE = 128


def _round_up(v, m):
    return (v + m - 1) // m * m


def _pad_axis(a, target, axis):
    pad = target - a.shape[axis]
    if pad <= 0:
        return a
    cfg = [(0, 0)] * a.ndim
    cfg[axis] = (0, pad)
    return jnp.pad(a, cfg)


def _mlp_kernel(x_ref, w1_ref, b1_ref, w2_ref, b2_ref, wc_ref, bc_ref, o_ref):
    # Encoder layer 1: Linear + ReLU (bf16 MXU operands, f32 accumulate).
    h = jnp.dot(x_ref[...], w1_ref[...], preferred_element_type=jnp.float32)
    h = jnp.maximum(h + b1_ref[...], 0.0)
    # Encoder layer 2: Linear + ReLU.
    h = jnp.dot(h.astype(w2_ref.dtype), w2_ref[...],
                preferred_element_type=jnp.float32)
    h = jnp.maximum(h + b2_ref[...], 0.0)
    # Classifier head: Linear (no activation).
    out = jnp.dot(h.astype(wc_ref.dtype), wc_ref[...],
                  preferred_element_type=jnp.float32) + bc_ref[...]
    o_ref[...] = out.astype(o_ref.dtype)


def prepare_params(w1, b1, w2, b2, wc, bc, compute_dtype=jnp.bfloat16):
    """One-time parameter prep (hoisted out of the per-call forward path).

    Pads hidden/output feature dims to lane multiples and casts MXU-facing
    weights to bf16.  W1's row dim stays at in_dim: the x feature dim is not
    lane-padded (the kernel block's last dim equals the full array dim, which
    Mosaic lane-pads in VMEM for free).
    Biases stay f32: they are added to the f32 accumulator.
    """
    in_dim, hidden = w1.shape
    out_dim = wc.shape[1]
    hid_p = _round_up(hidden, LANE)
    out_p = _round_up(out_dim, LANE)

    w1p = _pad_axis(w1, hid_p, 1).astype(compute_dtype)
    w2p = _pad_axis(_pad_axis(w2, hid_p, 0), hid_p, 1).astype(compute_dtype)
    wcp = _pad_axis(_pad_axis(wc, hid_p, 0), out_p, 1).astype(compute_dtype)
    b1p = _pad_axis(b1.reshape(1, -1), hid_p, 1).astype(jnp.float32)
    b2p = _pad_axis(b2.reshape(1, -1), hid_p, 1).astype(jnp.float32)
    bcp = _pad_axis(bc.reshape(1, -1), out_p, 1).astype(jnp.float32)
    return (w1p, b1p, w2p, b2p, wcp, bcp), out_dim


@functools.partial(jax.jit, static_argnames=("tile_n", "out_dim", "out_dtype"))
def mlp_forward(x, w1p, b1p, w2p, b2p, wcp, bcp, *,
                tile_n=512, out_dim, out_dtype=jnp.bfloat16):
    """Fused 3-layer MLP forward.  Expects params from prepare_params()."""
    n, in_dim = x.shape
    hid_p = w1p.shape[1]
    out_p = wcp.shape[1]
    compute_dtype = w1p.dtype

    # Big tiles for the HBM-bound stream, but keep >=2 grid steps when N
    # allows so the "parallel" axis can shard across v7x's 2 TensorCores.
    tile = min(tile_n, max(LANE, _round_up(max(n // 2, 1), LANE)))
    n_p = _round_up(n, tile)

    # Only the node axis of x is padded; feature dim stays = in_dim (block
    # last dim == full array dim is legal -> no 8x-inflated input stream).
    # Cast to bf16 before padding so no f32 padded intermediate is written.
    xp = _pad_axis(x.astype(compute_dtype), n_p, 0)

    grid = (n_p // tile,)
    full = lambda i: (0, 0)
    in_specs = [
        pl.BlockSpec((tile, in_dim), lambda i: (i, 0)),  # x tile (streamed)
        pl.BlockSpec((in_dim, hid_p), full),             # W1 (VMEM-resident)
        pl.BlockSpec((1, hid_p), full),                  # b1
        pl.BlockSpec((hid_p, hid_p), full),              # W2
        pl.BlockSpec((1, hid_p), full),                  # b2
        pl.BlockSpec((hid_p, out_p), full),              # Wc
        pl.BlockSpec((1, out_p), full),                  # bc
    ]
    # Lane-dense (multiple-of-128) output slab, written in bf16 to halve the
    # dominant HBM write stream.
    out_spec = pl.BlockSpec((tile, out_p), lambda i: (i, 0))

    out = pl.pallas_call(
        _mlp_kernel,
        out_shape=jax.ShapeDtypeStruct((n_p, out_p), out_dtype),
        grid_spec=pl.GridSpec(
            grid=grid,
            in_specs=in_specs,
            out_specs=out_spec,
        ),
        compiler_params=pltpu.CompilerParams(
            dimension_semantics=("parallel",),
            vmem_limit_bytes=32 * 1024 * 1024,  # safe on v5e/v6e/v7x
        ),
    )(xp, w1p, b1p, w2p, b2p, wcp, bcp)

    # Trim node / output-dim padding (cheap: bf16, kept for API correctness).
    return out[:n, :out_dim]


def init_params(key, input_dim, hidden, output_dim):
    """Deterministic synthetic parameter init (Xavier-ish uniform)."""
    ks = jax.random.split(key, 6)

    def xavier(k, fan_in, fan_out):
        limit = (6.0 / (fan_in + fan_out)) ** 0.5
        return jax.random.uniform(
            k, (fan_in, fan_out), dtype=jnp.float32, minval=-limit, maxval=limit
        )

    w1 = xavier(ks[0], input_dim, hidden)
    b1 = jax.random.normal(ks[1], (1, hidden), jnp.float32) * 0.01
    w2 = xavier(ks[2], hidden, hidden)
    b2 = jax.random.normal(ks[3], (1, hidden), jnp.float32) * 0.01
    wc = xavier(ks[4], hidden, output_dim)
    bc = jnp.zeros((1, output_dim), jnp.float32)  # reset_classifier: bias = 0
    return w1, b1, w2, b2, wc, bc


def reference_forward(x, w1, b1, w2, b2, wc, bc, compute_dtype=jnp.float32):
    """Pure-JAX reference. With compute_dtype=bf16 it emulates the kernel's
    bf16-operand / f32-accumulate numerics."""
    c = lambda a: a.astype(compute_dtype)
    h = jnp.dot(c(x), c(w1), preferred_element_type=jnp.float32)
    h = jnp.maximum(h + b1, 0.0)
    h = jnp.dot(c(h), c(w2), preferred_element_type=jnp.float32)
    h = jnp.maximum(h + b2, 0.0)
    return jnp.dot(c(h), c(wc), preferred_element_type=jnp.float32) + bc


if __name__ == "__main__":
    # Shapes consistent with the module defaults: layer_num=2 encoder,
    # hidden_size=128, output_dim=70; small node count / input feature dim.
    N = 256          # number of graph nodes
    INPUT_DIM = 16
    HIDDEN = 128
    OUTPUT_DIM = 70

    key = jax.random.PRNGKey(0)
    k_x, k_p = jax.random.split(key)

    x = jax.random.normal(k_x, (N, INPUT_DIM), jnp.float32)
    # edge_index is part of the PyTorch signature but unused by the MLP encoder.
    edge_index = jnp.zeros((2, 512), jnp.int32)

    raw_params = init_params(k_p, INPUT_DIM, HIDDEN, OUTPUT_DIM)
    padded_params, out_dim = prepare_params(*raw_params)  # one-time prep

    out = mlp_forward(x, *padded_params, tile_n=512, out_dim=out_dim,
                      out_dtype=jnp.bfloat16)
    out = jax.block_until_ready(out)
    assert out.shape == (N, OUTPUT_DIM)
    assert out.dtype == jnp.bfloat16

    out_f32 = out.astype(jnp.float32)

    # Check against a bf16-operand / f32-accumulate reference (kernel numerics).
    ref_bf16 = reference_forward(x, *raw_params, compute_dtype=jnp.bfloat16)
    assert jnp.allclose(out_f32, ref_bf16, atol=3e-2, rtol=3e-2), \
        "mismatch vs bf16-emulating reference"

    # Sanity check against the full-f32 reference with bf16-level tolerance.
    ref_f32 = reference_forward(x, *raw_params, compute_dtype=jnp.float32)
    assert jnp.allclose(out_f32, ref_f32, atol=6e-2, rtol=6e-2), \
        "mismatch vs f32 reference"

    print("KERNEL_OK")
</pallas_src>

<mosaic_0001>
module attributes {stable_mosaic.version = 11 : i64} {
  func.func @_mlp_kernel(%arg0: i32, %arg1: memref<128x16xbf16, #tpu.memory_space<vmem>>, %arg2: memref<16x128xbf16, #tpu.memory_space<vmem>>, %arg3: memref<1x128xf32, #tpu.memory_space<vmem>>, %arg4: memref<128x128xbf16, #tpu.memory_space<vmem>>, %arg5: memref<1x128xf32, #tpu.memory_space<vmem>>, %arg6: memref<128x128xbf16, #tpu.memory_space<vmem>>, %arg7: memref<1x128xf32, #tpu.memory_space<vmem>>, %arg8: memref<128x128xbf16, #tpu.memory_space<vmem>>) attributes {dimension_semantics = [#tpu.dimension_semantics<parallel>], iteration_bounds = array<i64: 2>, scalar_prefetch = 0 : i64, scratch_operands = 0 : i64, tpu.core_type = #tpu.core_type<tc>, window_params = [{transform_indices = @transform_0, window_bounds = array<i64: 128, 16>}, {pipeline_mode = #tpu.pipeline_mode<synchronous>, transform_indices = @transform_1, window_bounds = array<i64: 16, 128>}, {pipeline_mode = #tpu.pipeline_mode<synchronous>, transform_indices = @transform_2, window_bounds = array<i64: 1, 128>}, {pipeline_mode = #tpu.pipeline_mode<synchronous>, transform_indices = @transform_3, window_bounds = array<i64: 128, 128>}, {pipeline_mode = #tpu.pipeline_mode<synchronous>, transform_indices = @transform_4, window_bounds = array<i64: 1, 128>}, {pipeline_mode = #tpu.pipeline_mode<synchronous>, transform_indices = @transform_5, window_bounds = array<i64: 128, 128>}, {pipeline_mode = #tpu.pipeline_mode<synchronous>, transform_indices = @transform_6, window_bounds = array<i64: 1, 128>}, {transform_indices = @transform_7, window_bounds = array<i64: 128, 128>}]} {
    %c0 = arith.constant 0 : index
    %c0_0 = arith.constant 0 : index
    %0 = vector.load %arg1[%c0, %c0_0] : memref<128x16xbf16, #tpu.memory_space<vmem>>, vector<128x16xbf16>
    %c0_1 = arith.constant 0 : index
    %c0_2 = arith.constant 0 : index
    %1 = vector.load %arg2[%c0_1, %c0_2] : memref<16x128xbf16, #tpu.memory_space<vmem>>, vector<16x128xbf16>
    %cst = arith.constant dense<0.000000e+00> : vector<128x128xf32>
    %2 = tpu.matmul %0, %1, %cst {dimension_numbers = #tpu.dot_dimension_numbers<[1], [0], [0], [1], [0, 0, 1, 1], [], []>} : vector<128x16xbf16>, vector<16x128xbf16>, vector<128x128xf32> -> vector<128x128xf32>
    %c0_3 = arith.constant 0 : index
    %c0_4 = arith.constant 0 : index
    %3 = vector.load %arg3[%c0_3, %c0_4] : memref<1x128xf32, #tpu.memory_space<vmem>>, vector<1x128xf32>
    %4 = vector.broadcast %3 : vector<1x128xf32> to vector<128x128xf32>
    %5 = arith.addf %2, %4 : vector<128x128xf32>
    %cst_5 = arith.constant 0.000000e+00 : f32
    %6 = vector.broadcast %cst_5 : f32 to vector<128x128xf32>
    %7 = arith.maximumf %5, %6 : vector<128x128xf32>
    %8 = arith.truncf %7 : vector<128x128xf32> to vector<128x128xbf16>
    %c0_6 = arith.constant 0 : index
    %c0_7 = arith.constant 0 : index
    %9 = vector.load %arg4[%c0_6, %c0_7] : memref<128x128xbf16, #tpu.memory_space<vmem>>, vector<128x128xbf16>
    %cst_8 = arith.constant dense<0.000000e+00> : vector<128x128xf32>
    %10 = tpu.matmul %8, %9, %cst_8 {dimension_numbers = #tpu.dot_dimension_numbers<[1], [0], [0], [1], [0, 0, 1, 1], [], []>} : vector<128x128xbf16>, vector<128x128xbf16>, vector<128x128xf32> -> vector<128x128xf32>
    %c0_9 = arith.constant 0 : index
    %c0_10 = arith.constant 0 : index
    %11 = vector.load %arg5[%c0_9, %c0_10] : memref<1x128xf32, #tpu.memory_space<vmem>>, vector<1x128xf32>
    %12 = vector.broadcast %11 : vector<1x128xf32> to vector<128x128xf32>
    %13 = arith.addf %10, %12 : vector<128x128xf32>
    %cst_11 = arith.constant 0.000000e+00 : f32
    %14 = vector.broadcast %cst_11 : f32 to vector<128x128xf32>
    %15 = arith.maximumf %13, %14 : vector<128x128xf32>
    %16 = arith.truncf %15 : vector<128x128xf32> to vector<128x128xbf16>
    %c0_12 = arith.constant 0 : index
    %c0_13 = arith.constant 0 : index
    %17 = vector.load %arg6[%c0_12, %c0_13] : memref<128x128xbf16, #tpu.memory_space<vmem>>, vector<128x128xbf16>
    %cst_14 = arith.constant dense<0.000000e+00> : vector<128x128xf32>
    %18 = tpu.matmul %16, %17, %cst_14 {dimension_numbers = #tpu.dot_dimension_numbers<[1], [0], [0], [1], [0, 0, 1, 1], [], []>} : vector<128x128xbf16>, vector<128x128xbf16>, vector<128x128xf32> -> vector<128x128xf32>
    %c0_15 = arith.constant 0 : index
    %c0_16 = arith.constant 0 : index
    %19 = vector.load %arg7[%c0_15, %c0_16] : memref<1x128xf32, #tpu.memory_space<vmem>>, vector<1x128xf32>
    %20 = vector.broadcast %19 : vector<1x128xf32> to vector<128x128xf32>
    %21 = arith.addf %18, %20 : vector<128x128xf32>
    %22 = arith.truncf %21 : vector<128x128xf32> to vector<128x128xbf16>
    %c0_17 = arith.constant 0 : index
    %c0_18 = arith.constant 0 : index
    %23 = vector.load %arg8[%c0_17, %c0_18] : memref<128x128xbf16, #tpu.memory_space<vmem>>, vector<128x128xbf16>
    tpu.vector_store %arg8[%c0_17, %c0_18], %22 {strides = array<i32>} : memref<128x128xbf16, #tpu.memory_space<vmem>>, vector<128x128xbf16>,
    return
  }
  func.func @transform_0(%arg0: i32) -> (i32, i32) {
    %c0_i32 = arith.constant 0 : i32
    %c0_i32_0 = arith.constant 0 : i32
    return %arg0, %c0_i32 : i32, i32
  }
  func.func @transform_1(%arg0: i32) -> (i32, i32) {
    %c0_i32 = arith.constant 0 : i32
    %c0_i32_0 = arith.constant 0 : i32
    %c0_i32_1 = arith.constant 0 : i32
    return %c0_i32, %c0_i32_0 : i32, i32
  }
  func.func @transform_2(%arg0: i32) -> (i32, i32) {
    %c0_i32 = arith.constant 0 : i32
    %c0_i32_0 = arith.constant 0 : i32
    %c0_i32_1 = arith.constant 0 : i32
    return %c0_i32, %c0_i32_0 : i32, i32
  }
  func.func @transform_3(%arg0: i32) -> (i32, i32) {
    %c0_i32 = arith.constant 0 : i32
    %c0_i32_0 = arith.constant 0 : i32
    %c0_i32_1 = arith.constant 0 : i32
    return %c0_i32, %c0_i32_0 : i32, i32
  }
  func.func @transform_4(%arg0: i32) -> (i32, i32) {
    %c0_i32 = arith.constant 0 : i32
    %c0_i32_0 = arith.constant 0 : i32
    %c0_i32_1 = arith.constant 0 : i32
    return %c0_i32, %c0_i32_0 : i32, i32
  }
  func.func @transform_5(%arg0: i32) -> (i32, i32) {
    %c0_i32 = arith.constant 0 : i32
    %c0_i32_0 = arith.constant 0 : i32
    %c0_i32_1 = arith.constant 0 : i32
    return %c0_i32, %c0_i32_0 : i32, i32
  }
  func.func @transform_6(%arg0: i32) -> (i32, i32) {
    %c0_i32 = arith.constant 0 : i32
    %c0_i32_0 = arith.constant 0 : i32
    %c0_i32_1 = arith.constant 0 : i32
    return %c0_i32, %c0_i32_0 : i32, i32
  }
  func.func @transform_7(%arg0: i32) -> (i32, i32) {
    %c0_i32 = arith.constant 0 : i32
    %c0_i32_0 = arith.constant 0 : i32
    return %arg0, %c0_i32 : i32, i32
  }
}

</mosaic_0001>

<llo_original>
// kernel: mlp_forward.1
$region0: #{mlp_forward.1}
  #allocation0 [shape = 'u32[]', space=smem, size = 0x4, offset = 0x4, fixed_abs, tag = 'smem constant byte address 0x4 - core index']
  #allocation1 [shape = 'u32[72,128]{1,0:T(1,128)}', space=vmem, size = 0x9000, scoped, tag = 'internal scratch']
  %s0 = inlined_call_operand.vmem [shape: bf16[256,16], index: 0, kind: input, shape index: {}]
  %s1 = inlined_call_operand.vmem [shape: bf16[16,128], index: 1, kind: input, shape index: {}]
  %s2 = inlined_call_operand.vmem [shape: f32[1,128], index: 2, kind: input, shape index: {}]
  %s3 = inlined_call_operand.vmem [shape: bf16[128,128], index: 3, kind: input, shape index: {}]
  %s4 = inlined_call_operand.vmem [shape: f32[1,128], index: 4, kind: input, shape index: {}]
  %s5 = inlined_call_operand.vmem [shape: bf16[128,128], index: 5, kind: input, shape index: {}]
  %s6 = inlined_call_operand.vmem [shape: f32[1,128], index: 6, kind: input, shape index: {}]
  %s7 = inlined_call_operand.vmem [shape: bf16[256,128], index: 7, kind: output, shape index: {}]
  %s8 = sld [smem:[#allocation0]]
  $region61: #{mlp_forward.1} parent=0
    _
  %s10 = ssub.s32 1, %s8
  %s11 = scalar_select 0, %s10, %s8
  loop: start=0, step=1, limit=4
  $region2: #{mlp_forward.1} parent=0 // loop_pre_header
    _
  $region3: #{mlp_forward.1} parent=0 // loop_header
    %s13 = sphi 0, %s17
    %p14 = scmp.ge.s32.totalorder %s13, 4
    %s23 = sphi 0, %s25
    %s26 = sphi 0, %s23
    %s27 = sphi 0, %s26
    %s43 = sphi 0, %s27
    %s47 = sphi 0, %s47
    %s49 = sphi 0, %s47
    %s50 = sphi 0, %s49
    %s64 = sphi 0, %s50
    %s68 = sphi 0, %s68
    %s70 = sphi 0, %s68
    %s71 = sphi 0, %s70
    %s85 = sphi 0, %s71
    %s89 = sphi 0, %s89
    %s91 = sphi 0, %s89
    %s92 = sphi 0, %s91
    %s106 = sphi 0, %s92
    %s110 = sphi 0, %s110
    %s112 = sphi 0, %s110
    %s113 = sphi 0, %s112
    %s127 = sphi 0, %s113
    %s131 = sphi 0, %s131
    %s133 = sphi 0, %s131
    %s134 = sphi 0, %s133
    %s148 = sphi 0, %s134
    %s152 = sphi 0, %s152
    %s154 = sphi 0, %s152
    %s155 = sphi 0, %s154
    %s169 = sphi 0, %s155
    %s175 = sphi 0, %s177
    %s178 = sphi 0, %s175
    %s179 = sphi 0, %s178
    %s195 = sphi 0, %s179
  $region4: #{mlp_forward.1} parent=0 // loop_header_branch
    %16 = sbr.rel (%p14) target = $region8
  $region5: #{mlp_forward.1} parent=0 // loop_body
    %s18 = ssub.s32 %s13, 1
    %s19 = ssub.s32 %s13, 2
    %s20 = sadd.s32 %s13, 1
    %s21 = ssub.s32 %s13, %s20
    %p22 = scmp.eq.s32.totalorder %s21, 0
    %s24 = sadd.s32 %s23, 1
    %s25 = scalar_select %p22, %s23, %s24
    %p28 = pneg %p22
    %p29 = scmp.eq.s32.totalorder %s13, 1
    %p30 = por %p28, %p29
    %p31 = scmp.ne.s32.totalorder %s23, %s26
    %p32 = scmp.eq.s32.totalorder %s13, 0
    %p33 = por %p31, %p32
    %p34 = scmp.ne.s32.totalorder %s23, %s26
    %p35 = scmp.eq.s32.totalorder %s18, 1
    %p36 = por %p34, %p35
    %p37 = scmp.ne.s32.totalorder %s26, %s27
    %p38 = scmp.eq.s32.totalorder %s18, 0
    %p39 = por %p37, %p38
    %p40 = scmp.ne.s32.totalorder %s26, %s27
    %p41 = scmp.eq.s32.totalorder %s19, 1
    %p42 = por %p40, %p41
    %p44 = scmp.ne.s32.totalorder %s27, %s43
    %p45 = scmp.eq.s32.totalorder %s19, 0
    %p46 = por %p44, %p45
    %s48 = sadd.s32 %s47, 1
    %p51 = scmp.eq.s32.totalorder %s13, 1
    %p52 = scmp.ne.s32.totalorder %s47, %s49
    %p53 = scmp.eq.s32.totalorder %s13, 0
    %p54 = por %p52, %p53
    %p55 = scmp.ne.s32.totalorder %s47, %s49
    %p56 = scmp.eq.s32.totalorder %s18, 1
    %p57 = por %p55, %p56
    %p58 = scmp.ne.s32.totalorder %s49, %s50
    %p59 = scmp.eq.s32.totalorder %s18, 0
    %p60 = por %p58, %p59
    %p61 = scmp.ne.s32.totalorder %s49, %s50
    %p62 = scmp.eq.s32.totalorder %s19, 1
    %p63 = por %p61, %p62
    %p65 = scmp.ne.s32.totalorder %s50, %s64
    %p66 = scmp.eq.s32.totalorder %s19, 0
    %p67 = por %p65, %p66
    %s69 = sadd.s32 %s68, 1
    %p72 = scmp.eq.s32.totalorder %s13, 1
    %p73 = scmp.ne.s32.totalorder %s68, %s70
    %p74 = scmp.eq.s32.totalorder %s13, 0
    %p75 = por %p73, %p74
    %p76 = scmp.ne.s32.totalorder %s68, %s70
    %p77 = scmp.eq.s32.totalorder %s18, 1
    %p78 = por %p76, %p77
    %p79 = scmp.ne.s32.totalorder %s70, %s71
    %p80 = scmp.eq.s32.totalorder %s18, 0
    %p81 = por %p79, %p80
    %p82 = scmp.ne.s32.totalorder %s70, %s71
    %p83 = scmp.eq.s32.totalorder %s19, 1
    %p84 = por %p82, %p83
    %p86 = scmp.ne.s32.totalorder %s71, %s85
    %p87 = scmp.eq.s32.totalorder %s19, 0
    %p88 = por %p86, %p87
    %s90 = sadd.s32 %s89, 1
    %p93 = scmp.eq.s32.totalorder %s13, 1
    %p94 = scmp.ne.s32.totalorder %s89, %s91
    %p95 = scmp.eq.s32.totalorder %s13, 0
    %p96 = por %p94, %p95
    %p97 = scmp.ne.s32.totalorder %s89, %s91
    %p98 = scmp.eq.s32.totalorder %s18, 1
    %p99 = por %p97, %p98
    %p100 = scmp.ne.s32.totalorder %s91, %s92
    %p101 = scmp.eq.s32.totalorder %s18, 0
    %p102 = por %p100, %p101
    %p103 = scmp.ne.s32.totalorder %s91, %s92
    %p104 = scmp.eq.s32.totalorder %s19, 1
    %p105 = por %p103, %p104
    %p107 = scmp.ne.s32.totalorder %s92, %s106
    %p108 = scmp.eq.s32.totalorder %s19, 0
    %p109 = por %p107, %p108
    %s111 = sadd.s32 %s110, 1
    %p114 = scmp.eq.s32.totalorder %s13, 1
    %p115 = scmp.ne.s32.totalorder %s110, %s112
    %p116 = scmp.eq.s32.totalorder %s13, 0
    %p117 = por %p115, %p116
    %p118 = scmp.ne.s32.totalorder %s110, %s112
    %p119 = scmp.eq.s32.totalorder %s18, 1
    %p120 = por %p118, %p119
    %p121 = scmp.ne.s32.totalorder %s112, %s113
    %p122 = scmp.eq.s32.totalorder %s18, 0
    %p123 = por %p121, %p122
    %p124 = scmp.ne.s32.totalorder %s112, %s113
    %p125 = scmp.eq.s32.totalorder %s19, 1
    %p126 = por %p124, %p125
    %p128 = scmp.ne.s32.totalorder %s113, %s127
    %p129 = scmp.eq.s32.totalorder %s19, 0
    %p130 = por %p128, %p129
    %s132 = sadd.s32 %s131, 1
    %p135 = scmp.eq.s32.totalorder %s13, 1
    %p136 = scmp.ne.s32.totalorder %s131, %s133
    %p137 = scmp.eq.s32.totalorder %s13, 0
    %p138 = por %p136, %p137
    %p139 = scmp.ne.s32.totalorder %s131, %s133
    %p140 = scmp.eq.s32.totalorder %s18, 1
    %p141 = por %p139, %p140
    %p142 = scmp.ne.s32.totalorder %s133, %s134
    %p143 = scmp.eq.s32.totalorder %s18, 0
    %p144 = por %p142, %p143
    %p145 = scmp.ne.s32.totalorder %s133, %s134
    %p146 = scmp.eq.s32.totalorder %s19, 1
    %p147 = por %p145, %p146
    %p149 = scmp.ne.s32.totalorder %s134, %s148
    %p150 = scmp.eq.s32.totalorder %s19, 0
    %p151 = por %p149, %p150
    %s153 = sadd.s32 %s152, 1
    %p156 = scmp.eq.s32.totalorder %s13, 1
    %p157 = scmp.ne.s32.totalorder %s152, %s154
    %p158 = scmp.eq.s32.totalorder %s13, 0
    %p159 = por %p157, %p158
    %p160 = scmp.ne.s32.totalorder %s152, %s154
    %p161 = scmp.eq.s32.totalorder %s18, 1
    %p162 = por %p160, %p161
    %p163 = scmp.ne.s32.totalorder %s154, %s155
    %p164 = scmp.eq.s32.totalorder %s18, 0
    %p165 = por %p163, %p164
    %p166 = scmp.ne.s32.totalorder %s154, %s155
    %p167 = scmp.eq.s32.totalorder %s19, 1
    %p168 = por %p166, %p167
    %p170 = scmp.ne.s32.totalorder %s155, %s169
    %p171 = scmp.eq.s32.totalorder %s19, 0
    %p172 = por %p170, %p171
    %s173 = ssub.s32 %s13, %s20
    %p174 = scmp.eq.s32.totalorder %s173, 0
    %s176 = sadd.s32 %s175, 1
    %s177 = scalar_select %p174, %s175, %s176
    %p180 = pneg %p174
    %p181 = scmp.eq.s32.totalorder %s13, 1
    %p182 = por %p180, %p181
    %p183 = scmp.ne.s32.totalorder %s175, %s178
    %p184 = scmp.eq.s32.totalorder %s13, 0
    %p185 = por %p183, %p184
    %p186 = scmp.ne.s32.totalorder %s175, %s178
    %p187 = scmp.eq.s32.totalorder %s18, 1
    %p188 = por %p186, %p187
    %p189 = scmp.ne.s32.totalorder %s178, %s179
    %p190 = scmp.eq.s32.totalorder %s18, 0
    %p191 = por %p189, %p190
    %p192 = scmp.ne.s32.totalorder %s178, %s179
    %p193 = scmp.eq.s32.totalorder %s19, 1
    %p194 = por %p192, %p193
    %p196 = scmp.ne.s32.totalorder %s179, %s195
    %p197 = scmp.eq.s32.totalorder %s19, 0
    %p198 = por %p196, %p197
    %p199 = scmp.le.s32.totalorder 1, %s13
    %p200 = scmp.lt.s32.totalorder %s13, 3
    %p201 = pnand %p199, %p200
    %p202 = pneg %p201
    // Predicated region
    $region9: #{mlp_forward.1} parent=5 // pred_check
      _
    $region10: #{mlp_forward.1} parent=5 // pred_check_branch
      %204 = sbr.rel (%p201) target = $region12
    $region11: #{mlp_forward.1} parent=5 // pred_region
      %s205 = ssub.s32 %s13, 1
      // Predicated region
      $region13: #{mlp_forward.1} parent=11 // pred_check
        %p206 = pneg %p60
      $region14: #{mlp_forward.1} parent=11 // pred_check_branch
        %208 = sbr.rel (%p206) target = $region16
      $region15: #{mlp_forward.1} parent=11 // pred_region
        _
      $region16: #{mlp_forward.1} parent=11 // pred_fallthru
        _
      // Predicated region
      $region17: #{mlp_forward.1} parent=11 // pred_check
        %p209 = pneg %p81
      $region18: #{mlp_forward.1} parent=11 // pred_check_branch
        %211 = sbr.rel (%p209) target = $region20
      $region19: #{mlp_forward.1} parent=11 // pred_region
        _
      $region20: #{mlp_forward.1} parent=11 // pred_fallthru
        _
      // Predicated region
      $region21: #{mlp_forward.1} parent=11 // pred_check
        %p212 = pneg %p102
      $region22: #{mlp_forward.1} parent=11 // pred_check_branch
        %214 = sbr.rel (%p212) target = $region24
      $region23: #{mlp_forward.1} parent=11 // pred_region
        _
      $region24: #{mlp_forward.1} parent=11 // pred_fallthru
        _
      // Predicated region
      $region25: #{mlp_forward.1} parent=11 // pred_check
        %p215 = pneg %p123
      $region26: #{mlp_forward.1} parent=11 // pred_check_branch
        %217 = sbr.rel (%p215) target = $region28
      $region27: #{mlp_forward.1} parent=11 // pred_region
        _
      $region28: #{mlp_forward.1} parent=11 // pred_fallthru
        _
      // Predicated region
      $region29: #{mlp_forward.1} parent=11 // pred_check
        %p218 = pneg %p144
      $region30: #{mlp_forward.1} parent=11 // pred_check_branch
        %220 = sbr.rel (%p218) target = $region32
      $region31: #{mlp_forward.1} parent=11 // pred_region
        _
      $region32: #{mlp_forward.1} parent=11 // pred_fallthru
        _
      // Predicated region
      $region33: #{mlp_forward.1} parent=11 // pred_check
        %p221 = pneg %p165
      $region34: #{mlp_forward.1} parent=11 // pred_check_branch
        %223 = sbr.rel (%p221) target = $region36
      $region35: #{mlp_forward.1} parent=11 // pred_region
        _
      $region36: #{mlp_forward.1} parent=11 // pred_fallthru
        _
    $region12: #{mlp_forward.1} parent=5 // pred_fallthru
      _
    %p224 = scmp.lt.s32.totalorder %s13, 2
    // Predicated region
    $region37: #{mlp_forward.1} parent=5 // pred_check
      %p225 = pneg %p224
    $region38: #{mlp_forward.1} parent=5 // pred_check_branch
      %227 = sbr.rel (%p225) target = $region40
    $region39: #{mlp_forward.1} parent=5 // pred_region
      // Predicated region
      $region41: #{mlp_forward.1} parent=39 // pred_check
        %p228 = pneg %p33
      $region42: #{mlp_forward.1} parent=39 // pred_check_branch
        %230 = sbr.rel (%p228) target = $region44
      $region43: #{mlp_forward.1} parent=39 // pred_region
        %s231 = smul.u32 16, %s13
        %p232 = scmp.lt.s32.totalorder %s231, 31
        %s233 = scalar_select %p232, %s231, 31
        %s234 = smul.addr %s233, 4
        %s235 = scalar_lea.vmem %s0, %s234
        %s236 = smul.u32 16, %s13
      $region44: #{mlp_forward.1} parent=39 // pred_fallthru
        _
    $region40: #{mlp_forward.1} parent=5 // pred_fallthru
      _
    %p237 = scmp.le.s32.totalorder 1, %s13
    %p238 = scmp.lt.s32.totalorder %s13, 3
    %p239 = pnand %p237, %p238
    %p240 = pneg %p239
    // Predicated region
    $region45: #{mlp_forward.1} parent=5 // pred_check
      _
    $region46: #{mlp_forward.1} parent=5 // pred_check_branch
      %242 = sbr.rel (%p239) target = $region48
    $region47: #{mlp_forward.1} parent=5 // pred_region
      %s243 = ssub.s32 %s13, 1
      %s244 = smul.u32 16, %s18
      %p245 = scmp.lt.s32.totalorder %s244, 31
      %s246 = scalar_select %p245, %s244, 31
      %s247 = smul.addr %s246, 4
      %s248 = scalar_lea.vmem %s0, %s247
      %p249 = pneg %p39
      %p250 = pneg %p36
      %p251 = pneg %p60
      %p252 = pneg %p57
      %p253 = pneg %p81
      %p254 = pneg %p78
      %p255 = pneg %p102
      %p256 = pneg %p99
      %p257 = pneg %p123
      %p258 = pneg %p120
      %p259 = pneg %p144
      %p260 = pneg %p141
      %p261 = pneg %p165
      %p262 = pneg %p162
      %p263 = pneg %p191
      %p264 = pneg %p188
      %s265 = smul.u32 16, %s18
      %p266 = scmp.lt.s32.totalorder %s265, 31
      %s267 = scalar_select %p266, %s265, 31
      %s268 = smul.addr %s267, 4
      %s269 = scalar_lea.vmem %s7, %s268
      %s270 = smul.u32 16, %s18
      %p271 = scmp.lt.s32.totalorder %s270, 31
      %s272 = scalar_select %p271, %s270, 31
      %s273 = smul.addr %s272, 4
      %s274 = scalar_lea.vmem %s0, %s273
      %s275 = smul.u32 16, %s18
      %s276 = smul.u32 16, %s18
      %p277 = scmp.lt.s32.totalorder %s276, 31
      %s278 = scalar_select %p277, %s276, 31
      %s279 = smul.addr %s278, 4
      %s280 = scalar_lea.vmem %s7, %s279
      %s281 = smul.u32 16, %s18
      %v283 = vld [vmem:[%s274] sm:$0xf]
      %v284 = vld [vmem:[%s274 + $0x4] sm:$0xf]
      %v285 = vld [vmem:[%s274 + $0x8] sm:$0xf]
      %v286 = vld [vmem:[%s274 + $0xc] sm:$0xf]
      %v287 = vld [vmem:[%s274 + $0x10] sm:$0xf]
      %v288 = vld [vmem:[%s274 + $0x14] sm:$0xf]
      %v289 = vld [vmem:[%s274 + $0x18] sm:$0xf]
      %v290 = vld [vmem:[%s274 + $0x1c] sm:$0xf]
      %v291 = vld [vmem:[%s274 + $0x20] sm:$0xf]
      %v292 = vld [vmem:[%s274 + $0x24] sm:$0xf]
      %v293 = vld [vmem:[%s274 + $0x28] sm:$0xf]
      %v294 = vld [vmem:[%s274 + $0x2c] sm:$0xf]
      %v295 = vld [vmem:[%s274 + $0x30] sm:$0xf]
      %v296 = vld [vmem:[%s274 + $0x34] sm:$0xf]
      %v297 = vld [vmem:[%s274 + $0x38] sm:$0xf]
      %v298 = vld [vmem:[%s274 + $0x3c] sm:$0xf]
      %v299 = vld [vmem:[%s1] sm:$0xf]
      %v300 = vld [vmem:[%s1 + $0x4] sm:$0xf]
      %v301 = vld [vmem:[%s2] sm:$0x1]
      %v303 = vperm.slane %v301, 0
      %v321 = vunpack.c.l.b16 %v283
      %v322 = vunpack.c.l.b16 %v284
      %v323 = vunpack.c.l.b16 %v285
      %v324 = vunpack.c.l.b16 %v286
      %v325 = vunpack.c.l.b16 %v287
      %v326 = vunpack.c.l.b16 %v288
      %v327 = vunpack.c.l.b16 %v289
      %v328 = vunpack.c.l.b16 %v290
      %v329 = vunpack.c.l.b16 %v291
      %v330 = vunpack.c.l.b16 %v292
      %v331 = vunpack.c.l.b16 %v293
      %v332 = vunpack.c.l.b16 %v294
      %v333 = vunpack.c.l.b16 %v295
      %v334 = vunpack.c.l.b16 %v296
      %v335 = vunpack.c.l.b16 %v297
      %v336 = vunpack.c.l.b16 %v298
      %v337 = vpack.c.b16 %v322, %v321
      %v338 = vpack.c.b16 %v324, %v323
      %v339 = vpack.c.b16 %v326, %v325
      %v340 = vpack.c.b16 %v328, %v327
      %v341 = vpack.c.b16 %v330, %v329
      %v342 = vpack.c.b16 %v332, %v331
      %v343 = vpack.c.b16 %v334, %v333
      %v344 = vpack.c.b16 %v336, %v335
      %v347 = vunpack.c.l.b16 %v299
      %v348 = vunpack.c.l.b16 %v300
      %v349 = vpack.c.b16 %v348, %v347
      %vm351 = vcmask 130048
      %v353 = vsel %vm351, %v337, 0
      %v356 = vsel %vm351, %v338, 0
      %v359 = vsel %vm351, %v339, 0
      %v362 = vsel %vm351, %v340, 0
      %v365 = vsel %vm351, %v341, 0
      %v368 = vsel %vm351, %v342, 0
      %v371 = vsel %vm351, %v343, 0
      %v374 = vsel %vm351, %v344, 0
      %376 = vmatpush.bf16.msra.mxu0 0
      %377 = vmatpush.bf16.msra.mxu0 0
      %378 = vmatpush.bf16.msra.mxu0 0
      %379 = vmatpush.bf16.msra.mxu0 0
      %380 = vmatpush.bf16.msra.mxu0 0
      %381 = vmatpush.bf16.msra.mxu0 0
      %382 = vmatpush.bf16.msra.mxu0 0
      %383 = vmatpush.bf16.msra.mxu0 %v349
      %384 = vmatmul.bf16.gmra.mxu0 %v353
      %v385 = vpop.f32.mrf.mxu0
      %v386 = vadd.f32 %v303, %v385
      %v387 = vpop.f32.mrf.mxu0
      %v388 = vadd.f32 %v303, %v387
      %389 = vmatmul.bf16.gmra.mxu0 %v356
      %v390 = vpop.f32.mrf.mxu0
      %v391 = vadd.f32 %v303, %v390
      %v392 = vpop.f32.mrf.mxu0
      %v393 = vadd.f32 %v303, %v392
      %394 = vmatmul.bf16.gmra.mxu0 %v359
      %v395 = vpop.f32.mrf.mxu0
      %v396 = vadd.f32 %v303, %v395
      %v397 = vpop.f32.mrf.mxu0
      %v398 = vadd.f32 %v303, %v397
      %399 = vmatmul.bf16.gmra.mxu0 %v362
      %v400 = vpop.f32.mrf.mxu0
      %v401 = vadd.f32 %v303, %v400
      %v402 = vpop.f32.mrf.mxu0
      %v403 = vadd.f32 %v303, %v402
      %404 = vmatmul.bf16.gmra.mxu0 %v365
      %v405 = vpop.f32.mrf.mxu0
      %v406 = vadd.f32 %v303, %v405
      %v407 = vpop.f32.mrf.mxu0
      %v408 = vadd.f32 %v303, %v407
      %409 = vmatmul.bf16.gmra.mxu0 %v368
      %v410 = vpop.f32.mrf.mxu0
      %v411 = vadd.f32 %v303, %v410
      %v412 = vpop.f32.mrf.mxu0
      %v413 = vadd.f32 %v303, %v412
      %414 = vmatmul.bf16.gmra.mxu0 %v371
      %v415 = vpop.f32.mrf.mxu0
      %v416 = vadd.f32 %v303, %v415
      %v417 = vpop.f32.mrf.mxu0
      %v418 = vadd.f32 %v303, %v417
      %419 = vmatmul.bf16.gmra.mxu0 %v374
      %v420 = vpop.f32.mrf.mxu0
      %v421 = vadd.f32 %v303, %v420
      %v422 = vpop.f32.mrf.mxu0
      %v423 = vadd.f32 %v303, %v422
      %424 = vdwg.mxu0
      %v425 = vmax.f32 %v386, 0.0
      %v426 = vmax.f32 %v388, 0.0
      %v427 = vmax.f32 %v391, 0.0
      %v428 = vmax.f32 %v393, 0.0
      %v429 = vmax.f32 %v396, 0.0
      %v430 = vmax.f32 %v398, 0.0
      %v431 = vmax.f32 %v401, 0.0
      %v432 = vmax.f32 %v403, 0.0
      %v433 = vmax.f32 %v406, 0.0
      %v434 = vmax.f32 %v408, 0.0
      %v435 = vmax.f32 %v411, 0.0
      %v436 = vmax.f32 %v413, 0.0
      %v437 = vmax.f32 %v416, 0.0
      %v438 = vmax.f32 %v418, 0.0
      %v439 = vmax.f32 %v421, 0.0
      %v440 = vmax.f32 %v423, 0.0
      %v441 = vpack.c.bf16 %v426, %v425
      %v442 = vpack.c.bf16 %v428, %v427
      %v443 = vpack.c.bf16 %v430, %v429
      %v444 = vpack.c.bf16 %v432, %v431
      %v445 = vpack.c.bf16 %v434, %v433
      %v446 = vpack.c.bf16 %v436, %v435
      %v447 = vpack.c.bf16 %v438, %v437
      %v448 = vpack.c.bf16 %v440, %v439
      %v449 = vld [vmem:[%s3] sm:$0xf]
      %v450 = vld [vmem:[%s3 + $0x4] sm:$0xf]
      %v451 = vld [vmem:[%s3 + $0x8] sm:$0xf]
      %v452 = vld [vmem:[%s3 + $0xc] sm:$0xf]
      %v453 = vld [vmem:[%s3 + $0x10] sm:$0xf]
      %v454 = vld [vmem:[%s3 + $0x14] sm:$0xf]
      %v455 = vld [vmem:[%s3 + $0x18] sm:$0xf]
      %v456 = vld [vmem:[%s3 + $0x1c] sm:$0xf]
      %v457 = vld [vmem:[%s3 + $0x20] sm:$0xf]
      %v458 = vld [vmem:[%s3 + $0x24] sm:$0xf]
      %v459 = vld [vmem:[%s3 + $0x28] sm:$0xf]
      %v460 = vld [vmem:[%s3 + $0x2c] sm:$0xf]
      %v461 = vld [vmem:[%s3 + $0x30] sm:$0xf]
      %v462 = vld [vmem:[%s3 + $0x34] sm:$0xf]
      %v463 = vld [vmem:[%s3 + $0x38] sm:$0xf]
      %v464 = vld [vmem:[%s3 + $0x3c] sm:$0xf]
      %v465 = vld [vmem:[%s4] sm:$0x1]
      %v467 = vperm.slane %v465, 0
      %v485 = vunpack.c.l.b16 %v449
      %v486 = vunpack.c.l.b16 %v450
      %v487 = vunpack.c.l.b16 %v451
      %v488 = vunpack.c.l.b16 %v452
      %v489 = vunpack.c.l.b16 %v453
      %v490 = vunpack.c.l.b16 %v454
      %v491 = vunpack.c.l.b16 %v455
      %v492 = vunpack.c.l.b16 %v456
      %v493 = vunpack.c.l.b16 %v457
      %v494 = vunpack.c.l.b16 %v458
      %v495 = vunpack.c.l.b16 %v459
      %v496 = vunpack.c.l.b16 %v460
      %v497 = vunpack.c.l.b16 %v461
      %v498 = vunpack.c.l.b16 %v462
      %v499 = vunpack.c.l.b16 %v463
      %v500 = vunpack.c.l.b16 %v464
      %v501 = vpack.c.b16 %v486, %v485
      %v502 = vpack.c.b16 %v488, %v487
      %v503 = vpack.c.b16 %v490, %v489
      %v504 = vpack.c.b16 %v492, %v491
      %v505 = vpack.c.b16 %v494, %v493
      %v506 = vpack.c.b16 %v496, %v495
      %v507 = vpack.c.b16 %v498, %v497
      %v508 = vpack.c.b16 %v500, %v499
      %517 = vmatpush.bf16.msra.mxu0 %v508
      %518 = vmatpush.bf16.msra.mxu0 %v507
      %519 = vmatpush.bf16.msra.mxu0 %v506
      %520 = vmatpush.bf16.msra.mxu0 %v505
      %521 = vmatpush.bf16.msra.mxu0 %v504
      %522 = vmatpush.bf16.msra.mxu0 %v503
      %523 = vmatpush.bf16.msra.mxu0 %v502
      %524 = vmatpush.bf16.msra.mxu0 %v501
      %525 = vmatmul.bf16.gmra.mxu0 %v441
      %v526 = vpop.f32.mrf.mxu0
      %v527 = vadd.f32 %v467, %v526
      %v528 = vpop.f32.mrf.mxu0
      %v529 = vadd.f32 %v467, %v528
      %530 = vmatmul.bf16.gmra.mxu0 %v442
      %v531 = vpop.f32.mrf.mxu0
      %v532 = vadd.f32 %v467, %v531
      %v533 = vpop.f32.mrf.mxu0
      %v534 = vadd.f32 %v467, %v533
      %535 = vmatmul.bf16.gmra.mxu0 %v443
      %v536 = vpop.f32.mrf.mxu0
      %v537 = vadd.f32 %v467, %v536
      %v538 = vpop.f32.mrf.mxu0
      %v539 = vadd.f32 %v467, %v538
      %540 = vmatmul.bf16.gmra.mxu0 %v444
      %v541 = vpop.f32.mrf.mxu0
      %v542 = vadd.f32 %v467, %v541
      %v543 = vpop.f32.mrf.mxu0
      %v544 = vadd.f32 %v467, %v543
      %545 = vmatmul.bf16.gmra.mxu0 %v445
      %v546 = vpop.f32.mrf.mxu0
      %v547 = vadd.f32 %v467, %v546
      %v548 = vpop.f32.mrf.mxu0
      %v549 = vadd.f32 %v467, %v548
      %550 = vmatmul.bf16.gmra.mxu0 %v446
      %v551 = vpop.f32.mrf.mxu0
      %v552 = vadd.f32 %v467, %v551
      %v553 = vpop.f32.mrf.mxu0
      %v554 = vadd.f32 %v467, %v553
      %555 = vmatmul.bf16.gmra.mxu0 %v447
      %v556 = vpop.f32.mrf.mxu0
      %v557 = vadd.f32 %v467, %v556
      %v558 = vpop.f32.mrf.mxu0
      %v559 = vadd.f32 %v467, %v558
      %560 = vmatmul.bf16.gmra.mxu0 %v448
      %v561 = vpop.f32.mrf.mxu0
      %v562 = vadd.f32 %v467, %v561
      %v563 = vpop.f32.mrf.mxu0
      %v564 = vadd.f32 %v467, %v563
      %565 = vdwg.mxu0
      %v566 = vmax.f32 %v527, 0.0
      %v567 = vmax.f32 %v529, 0.0
      %v568 = vmax.f32 %v532, 0.0
      %v569 = vmax.f32 %v534, 0.0
      %v570 = vmax.f32 %v537, 0.0
      %v571 = vmax.f32 %v539, 0.0
      %v572 = vmax.f32 %v542, 0.0
      %v573 = vmax.f32 %v544, 0.0
      %v574 = vmax.f32 %v547, 0.0
      %v575 = vmax.f32 %v549, 0.0
      %v576 = vmax.f32 %v552, 0.0
      %v577 = vmax.f32 %v554, 0.0
      %v578 = vmax.f32 %v557, 0.0
      %v579 = vmax.f32 %v559, 0.0
      %v580 = vmax.f32 %v562, 0.0
      %v581 = vmax.f32 %v564, 0.0
      %v582 = vpack.c.bf16 %v567, %v566
      %v583 = vpack.c.bf16 %v569, %v568
      %v584 = vpack.c.bf16 %v571, %v570
      %v585 = vpack.c.bf16 %v573, %v572
      %v586 = vpack.c.bf16 %v575, %v574
      %v587 = vpack.c.bf16 %v577, %v576
      %v588 = vpack.c.bf16 %v579, %v578
      %v589 = vpack.c.bf16 %v581, %v580
      %v590 = vld [vmem:[%s5] sm:$0xf]
      %v591 = vld [vmem:[%s5 + $0x4] sm:$0xf]
      %v592 = vld [vmem:[%s5 + $0x8] sm:$0xf]
      %v593 = vld [vmem:[%s5 + $0xc] sm:$0xf]
      %v594 = vld [vmem:[%s5 + $0x10] sm:$0xf]
      %v595 = vld [vmem:[%s5 + $0x14] sm:$0xf]
      %v596 = vld [vmem:[%s5 + $0x18] sm:$0xf]
      %v597 = vld [vmem:[%s5 + $0x1c] sm:$0xf]
      %v598 = vld [vmem:[%s5 + $0x20] sm:$0xf]
      %v599 = vld [vmem:[%s5 + $0x24] sm:$0xf]
      %v600 = vld [vmem:[%s5 + $0x28] sm:$0xf]
      %v601 = vld [vmem:[%s5 + $0x2c] sm:$0xf]
      %v602 = vld [vmem:[%s5 + $0x30] sm:$0xf]
      %v603 = vld [vmem:[%s5 + $0x34] sm:$0xf]
      %v604 = vld [vmem:[%s5 + $0x38] sm:$0xf]
      %v605 = vld [vmem:[%s5 + $0x3c] sm:$0xf]
      %v606 = vld [vmem:[%s6] sm:$0x1]
      %v608 = vperm.slane %v606, 0
      %v626 = vunpack.c.l.b16 %v590
      %v627 = vunpack.c.l.b16 %v591
      %v628 = vunpack.c.l.b16 %v592
      %v629 = vunpack.c.l.b16 %v593
      %v630 = vunpack.c.l.b16 %v594
      %v631 = vunpack.c.l.b16 %v595
      %v632 = vunpack.c.l.b16 %v596
      %v633 = vunpack.c.l.b16 %v597
      %v634 = vunpack.c.l.b16 %v598
      %v635 = vunpack.c.l.b16 %v599
      %v636 = vunpack.c.l.b16 %v600
      %v637 = vunpack.c.l.b16 %v601
      %v638 = vunpack.c.l.b16 %v602
      %v639 = vunpack.c.l.b16 %v603
      %v640 = vunpack.c.l.b16 %v604
      %v641 = vunpack.c.l.b16 %v605
      %v642 = vpack.c.b16 %v627, %v626
      %v643 = vpack.c.b16 %v629, %v628
      %v644 = vpack.c.b16 %v631, %v630
      %v645 = vpack.c.b16 %v633, %v632
      %v646 = vpack.c.b16 %v635, %v634
      %v647 = vpack.c.b16 %v637, %v636
      %v648 = vpack.c.b16 %v639, %v638
      %v649 = vpack.c.b16 %v641, %v640
      %658 = vmatpush.bf16.msra.mxu0 %v649
      %659 = vmatpush.bf16.msra.mxu0 %v648
      %660 = vmatpush.bf16.msra.mxu0 %v647
      %661 = vmatpush.bf16.msra.mxu0 %v646
      %662 = vmatpush.bf16.msra.mxu0 %v645
      %663 = vmatpush.bf16.msra.mxu0 %v644
      %664 = vmatpush.bf16.msra.mxu0 %v643
      %665 = vmatpush.bf16.msra.mxu0 %v642
      %666 = vmatmul.bf16.gmra.mxu0 %v582
      %v667 = vpop.f32.mrf.mxu0
      %v668 = vadd.f32 %v608, %v667
      %v669 = vpop.f32.mrf.mxu0
      %v670 = vadd.f32 %v608, %v669
      %671 = vmatmul.bf16.gmra.mxu0 %v583
      %v672 = vpop.f32.mrf.mxu0
      %v673 = vadd.f32 %v608, %v672
      %v674 = vpop.f32.mrf.mxu0
      %v675 = vadd.f32 %v608, %v674
      %676 = vmatmul.bf16.gmra.mxu0 %v584
      %v677 = vpop.f32.mrf.mxu0
      %v678 = vadd.f32 %v608, %v677
      %v679 = vpop.f32.mrf.mxu0
      %v680 = vadd.f32 %v608, %v679
      %681 = vmatmul.bf16.gmra.mxu0 %v585
      %v682 = vpop.f32.mrf.mxu0
      %v683 = vadd.f32 %v608, %v682
      %v684 = vpop.f32.mrf.mxu0
      %v685 = vadd.f32 %v608, %v684
      %686 = vmatmul.bf16.gmra.mxu0 %v586
      %v687 = vpop.f32.mrf.mxu0
      %v688 = vadd.f32 %v608, %v687
      %v689 = vpop.f32.mrf.mxu0
      %v690 = vadd.f32 %v608, %v689
      %691 = vmatmul.bf16.gmra.mxu0 %v587
      %v692 = vpop.f32.mrf.mxu0
      %v693 = vadd.f32 %v608, %v692
      %v694 = vpop.f32.mrf.mxu0
      %v695 = vadd.f32 %v608, %v694
      %696 = vmatmul.bf16.gmra.mxu0 %v588
      %v697 = vpop.f32.mrf.mxu0
      %v698 = vadd.f32 %v608, %v697
      %v699 = vpop.f32.mrf.mxu0
      %v700 = vadd.f32 %v608, %v699
      %701 = vmatmul.bf16.gmra.mxu0 %v589
      %v702 = vpop.f32.mrf.mxu0
      %v703 = vadd.f32 %v608, %v702
      %v704 = vpop.f32.mrf.mxu0
      %v705 = vadd.f32 %v608, %v704
      %706 = vdwg.mxu0
      %v707 = vpack.c.bf16 %v668, %v668
      %v708 = vpack.c.bf16 %v670, %v670
      %v709 = vpack.c.bf16 %v673, %v673
      %v710 = vpack.c.bf16 %v675, %v675
      %v711 = vpack.c.bf16 %v678, %v678
      %v712 = vpack.c.bf16 %v680, %v680
      %v713 = vpack.c.bf16 %v683, %v683
      %v714 = vpack.c.bf16 %v685, %v685
      %v715 = vpack.c.bf16 %v688, %v688
      %v716 = vpack.c.bf16 %v690, %v690
      %v717 = vpack.c.bf16 %v693, %v693
      %v718 = vpack.c.bf16 %v695, %v695
      %v719 = vpack.c.bf16 %v698, %v698
      %v720 = vpack.c.bf16 %v700, %v700
      %v721 = vpack.c.bf16 %v703, %v703
      %v722 = vpack.c.bf16 %v705, %v705
      %723 = vst [vmem:[%s280] sm:$0xf] %v707
      %724 = vst [vmem:[%s280 + $0x4] sm:$0xf] %v708
      %725 = vst [vmem:[%s280 + $0x8] sm:$0xf] %v709
      %726 = vst [vmem:[%s280 + $0xc] sm:$0xf] %v710
      %727 = vst [vmem:[%s280 + $0x10] sm:$0xf] %v711
      %728 = vst [vmem:[%s280 + $0x14] sm:$0xf] %v712
      %729 = vst [vmem:[%s280 + $0x18] sm:$0xf] %v713
      %730 = vst [vmem:[%s280 + $0x1c] sm:$0xf] %v714
      %731 = vst [vmem:[%s280 + $0x20] sm:$0xf] %v715
      %732 = vst [vmem:[%s280 + $0x24] sm:$0xf] %v716
      %733 = vst [vmem:[%s280 + $0x28] sm:$0xf] %v717
      %734 = vst [vmem:[%s280 + $0x2c] sm:$0xf] %v718
      %735 = vst [vmem:[%s280 + $0x30] sm:$0xf] %v719
      %736 = vst [vmem:[%s280 + $0x34] sm:$0xf] %v720
      %737 = vst [vmem:[%s280 + $0x38] sm:$0xf] %v721
      %738 = vst [vmem:[%s280 + $0x3c] sm:$0xf] %v722
      %s739 = smul.u32 16, %s18
      %p740 = scmp.lt.s32.totalorder %s739, 31
      %s741 = scalar_select %p740, %s739, 31
      %s742 = smul.addr %s741, 4
      %s743 = scalar_lea.vmem %s7, %s742
      // Predicated region
      $region49: #{mlp_forward.1} parent=47 // pred_check
        %p744 = pneg %p188
      $region50: #{mlp_forward.1} parent=47 // pred_check_branch
        %746 = sbr.rel (%p744) target = $region52
      $region51: #{mlp_forward.1} parent=47 // pred_region
        %s747 = smul.u32 16, %s18
      $region52: #{mlp_forward.1} parent=47 // pred_fallthru
        _
    $region48: #{mlp_forward.1} parent=5 // pred_fallthru
      _
    %p748 = scmp.le.s32.totalorder 2, %s13
    // Predicated region
    $region53: #{mlp_forward.1} parent=5 // pred_check
      %p749 = pneg %p748
    $region54: #{mlp_forward.1} parent=5 // pred_check_branch
      %751 = sbr.rel (%p749) target = $region56
    $region55: #{mlp_forward.1} parent=5 // pred_region
      %s752 = ssub.s32 %s13, 2
      // Predicated region
      $region57: #{mlp_forward.1} parent=55 // pred_check
        %p753 = pneg %p194
      $region58: #{mlp_forward.1} parent=55 // pred_check_branch
        %755 = sbr.rel (%p753) target = $region60
      $region59: #{mlp_forward.1} parent=55 // pred_region
        %s756 = smul.u32 16, %s19
        %p757 = scmp.lt.s32.totalorder %s756, 31
        %s758 = scalar_select %p757, %s756, 31
        %s759 = smul.addr %s758, 4
        %s760 = scalar_lea.vmem %s7, %s759
      $region60: #{mlp_forward.1} parent=55 // pred_fallthru
        _
    $region56: #{mlp_forward.1} parent=5 // pred_fallthru
      _
  $region6: #{mlp_forward.1} parent=0 // loop_footer
    %s17 = sadd.s32 1, %s13
  $region7: #{mlp_forward.1} parent=0 // loop_footer_branch
    %12 = sbr.rel target = $region3
  $region8: #{mlp_forward.1} parent=0 // loop_exit
    _

</llo_original>
